<compile_context>
chip_gen: v6e
topology: v6e:2x2x1
jax: 0.10.0
libtpu: 0.0.40
codegen_flags: <defaults>
</compile_context>

<pallas_src>
import functools

import jax
import jax.numpy as jnp
from jax import lax
from jax.experimental import pallas as pl
from jax.experimental.pallas import tpu as pltpu


# ---------------------------------------------------------------------------
# Fused kernel
# ---------------------------------------------------------------------------

def _make_fused_kernel(layer_kinds, bt, seq):
    """layer_kinds: tuple of 'linear' / 'conv' for the mod_list layers."""

    def affine(x2, w_ref, b_ref, relu):
        # x2: (M, K) bf16, w_ref: (K, N) bf16, b_ref: (1, N) f32
        y = jnp.dot(x2, w_ref[...], preferred_element_type=jnp.float32)
        y = y + b_ref[...]                               # f32 epilogue on the VPU
        if relu:
            return jnp.maximum(y, 0.0).astype(jnp.bfloat16)
        return y                                         # final layer stays f32

    def conv1d(x2, w_ref, b_ref):
        # x2: (bt*seq, C) bf16 ; w_ref: (3*C, C_out) bf16, taps stacked [t-1, t, t+1]
        c = x2.shape[-1]
        x3 = x2.reshape(bt, seq, c)
        # In-kernel replicate padding along the sequence axis.
        xp = jnp.concatenate([x3[:, :1], x3, x3[:, -1:]], axis=1)         # (bt, seq+2, C)
        # Fuse the 3 taps into one matmul with K = 3*C.
        xcat = jnp.concatenate(
            [xp[:, 0:seq], xp[:, 1:seq + 1], xp[:, 2:seq + 2]], axis=-1)  # (bt, seq, 3C)
        return affine(xcat.reshape(bt * seq, 3 * c), w_ref, b_ref, relu=True)

    def kernel(x_ref, *refs):
        out_ref = refs[-1]
        wrefs = refs[:-1]

        c_in = x_ref.shape[-1]
        # Flatten (bt, seq) -> M rows; carry activations in bf16 for the MXU.
        x = x_ref[...].reshape(bt * seq, c_in).astype(jnp.bfloat16)

        idx = 0
        # pre_processor: Linear + ReLU
        x = affine(x, wrefs[idx], wrefs[idx + 1], relu=True)
        idx += 2
        # mod_list: alternating Linear / Conv1d (both followed by ReLU)
        for kind in layer_kinds:
            w_ref, b_ref = wrefs[idx], wrefs[idx + 1]
            idx += 2
            if kind == "conv":
                x = conv1d(x, w_ref, b_ref)
            else:
                x = affine(x, w_ref, b_ref, relu=True)
        # post_processor: Linear, no activation (f32 result)
        x = affine(x, wrefs[idx], wrefs[idx + 1], relu=False)

        out_ref[...] = x.reshape(bt, seq, -1).astype(out_ref.dtype)

    return kernel


# ---------------------------------------------------------------------------
# Wrapper
# ---------------------------------------------------------------------------

def mlp_conv_forward(x, params, layer_kinds, *, batch_tile=None):
    """x: (B, S, input_dim) f32 -> (B, S, output_dim) f32."""
    B, S, C_in = x.shape
    out_dim = params["post_w"].shape[-1]

    # Batch tile: grow M = bt*S toward ~256 rows while dividing B exactly.
    if batch_tile is None:
        bt = max(1, min(B, max(1, 256 // S)))
        while B % bt:
            bt -= 1
    else:
        bt = batch_tile
        assert B % bt == 0

    def as_bf16(w):
        return w.astype(jnp.bfloat16)

    def as_bias(b):
        return b.reshape(1, -1).astype(jnp.float32)

    # Flatten all layer parameters; conv weights (3, C_in, C_out) -> (3*C_in, C_out)
    # so the conv is a single K = 3*C_in matmul inside the kernel.
    flat = [as_bf16(params["pre_w"]), as_bias(params["pre_b"])]
    for kind, w, b in zip(layer_kinds, params["ws"], params["bs"]):
        if kind == "conv":
            k, ci, co = w.shape
            flat += [as_bf16(w.reshape(k * ci, co)), as_bias(b)]
        else:
            flat += [as_bf16(w), as_bias(b)]
    flat += [as_bf16(params["post_w"]), as_bias(params["post_b"])]

    kernel = _make_fused_kernel(tuple(layer_kinds), bt, S)

    x_spec = pl.BlockSpec((bt, S, C_in), lambda i: (i, 0, 0))
    # Weights/biases: full-array blocks, constant index_map -> VMEM-resident.
    w_specs = [pl.BlockSpec(a.shape, lambda i: (0, 0)) for a in flat]
    out_spec = pl.BlockSpec((bt, S, out_dim), lambda i: (i, 0, 0))

    return pl.pallas_call(
        kernel,
        out_shape=jax.ShapeDtypeStruct((B, S, out_dim), jnp.float32),
        grid=(B // bt,),
        in_specs=[x_spec] + w_specs,
        out_specs=out_spec,
        compiler_params=pltpu.CompilerParams(
            dimension_semantics=("parallel",),
            vmem_limit_bytes=64 << 20),
    )(x, *flat)


# ---------------------------------------------------------------------------
# Pure-JAX reference (independent lowering path) for the correctness check.
# Same bf16-operand / f32-accumulation policy as the kernel.
# ---------------------------------------------------------------------------

def _ref_forward(x, params, layer_kinds):
    def lin(h, w, b, relu):
        y = jnp.dot(h.astype(jnp.bfloat16), w.astype(jnp.bfloat16),
                    preferred_element_type=jnp.float32) + b
        return jnp.maximum(y, 0.0) if relu else y

    def conv(h, w, b):
        hp = jnp.pad(h, ((0, 0), (1, 1), (0, 0)), mode="edge")   # replicate pad
        y = lax.conv_general_dilated(
            hp.astype(jnp.bfloat16), w.astype(jnp.bfloat16),
            window_strides=(1,), padding="VALID",
            dimension_numbers=("NWC", "WIO", "NWC"),
            preferred_element_type=jnp.float32) + b
        return jnp.maximum(y, 0.0)

    h = lin(x, params["pre_w"], params["pre_b"], True)
    for kind, w, b in zip(layer_kinds, params["ws"], params["bs"]):
        h = conv(h, w, b) if kind == "conv" else lin(h, w, b, True)
    return lin(h, params["post_w"], params["post_b"], False)


# ---------------------------------------------------------------------------
# Deterministic parameter init (torch-like uniform fan-in init)
# ---------------------------------------------------------------------------

def _init_params(key, depth, input_dim, internal_dim, output_dim):
    layer_kinds = tuple("linear" if i % 2 == 0 else "conv" for i in range(depth))
    keys = iter(jax.random.split(key, 2 * (depth + 2)))

    def lin_init(fan_in, fan_out):
        bound = fan_in ** -0.5
        w = jax.random.uniform(next(keys), (fan_in, fan_out), jnp.float32, -bound, bound)
        b = jax.random.uniform(next(keys), (fan_out,), jnp.float32, -bound, bound)
        return w, b

    def conv_init(c_in, c_out, k=3):
        bound = (c_in * k) ** -0.5
        w = jax.random.uniform(next(keys), (k, c_in, c_out), jnp.float32, -bound, bound)
        b = jax.random.uniform(next(keys), (c_out,), jnp.float32, -bound, bound)
        return w, b

    pre_w, pre_b = lin_init(input_dim, internal_dim)
    ws, bs = [], []
    for kind in layer_kinds:
        w, b = (conv_init(internal_dim, internal_dim) if kind == "conv"
                else lin_init(internal_dim, internal_dim))
        ws.append(w)
        bs.append(b)
    post_w, post_b = lin_init(internal_dim, output_dim)

    params = dict(pre_w=pre_w, pre_b=pre_b, ws=ws, bs=bs,
                  post_w=post_w, post_b=post_b)
    return params, layer_kinds


if __name__ == "__main__":
    # Small shapes consistent with the module (scaled-down channel dims).
    depth = 4                                # mod_list: Linear, Conv1d, Linear, Conv1d
    input_dim, internal_dim, output_dim = 16, 32, 4
    B, S = 2, 16

    key = jax.random.PRNGKey(0)
    kp, kx = jax.random.split(key)
    params, layer_kinds = _init_params(kp, depth, input_dim, internal_dim, output_dim)
    x = jax.random.normal(kx, (B, S, input_dim), jnp.float32)

    run = jax.jit(functools.partial(mlp_conv_forward, layer_kinds=layer_kinds))
    out = jax.block_until_ready(run(x, params))
    assert out.shape == (B, S, output_dim), out.shape

    ref = jax.block_until_ready(_ref_forward(x, params, layer_kinds))
    max_err = float(jnp.max(jnp.abs(out - ref)))
    assert jnp.allclose(out, ref, rtol=1e-3, atol=1e-3), max_err

    print("KERNEL_OK")
</pallas_src>

<mosaic_0001>
module attributes {stable_mosaic.version = 11 : i64} {
  func.func @kernel(%arg0: i32, %arg1: memref<2x16x16xf32, #tpu.memory_space<vmem>>, %arg2: memref<16x32xbf16, #tpu.memory_space<vmem>>, %arg3: memref<1x32xf32, #tpu.memory_space<vmem>>, %arg4: memref<32x32xbf16, #tpu.memory_space<vmem>>, %arg5: memref<1x32xf32, #tpu.memory_space<vmem>>, %arg6: memref<96x32xbf16, #tpu.memory_space<vmem>>, %arg7: memref<1x32xf32, #tpu.memory_space<vmem>>, %arg8: memref<32x32xbf16, #tpu.memory_space<vmem>>, %arg9: memref<1x32xf32, #tpu.memory_space<vmem>>, %arg10: memref<96x32xbf16, #tpu.memory_space<vmem>>, %arg11: memref<1x32xf32, #tpu.memory_space<vmem>>, %arg12: memref<32x4xbf16, #tpu.memory_space<vmem>>, %arg13: memref<1x4xf32, #tpu.memory_space<vmem>>, %arg14: memref<2x16x4xf32, #tpu.memory_space<vmem>>) attributes {dimension_semantics = [#tpu.dimension_semantics<parallel>], iteration_bounds = array<i64: 1>, scalar_prefetch = 0 : i64, scratch_operands = 0 : i64, tpu.core_type = #tpu.core_type<tc>, window_params = [{transform_indices = @transform_0, window_bounds = array<i64: 2, 16, 16>}, {pipeline_mode = #tpu.pipeline_mode<synchronous>, transform_indices = @transform_1, window_bounds = array<i64: 16, 32>}, {pipeline_mode = #tpu.pipeline_mode<synchronous>, transform_indices = @transform_2, window_bounds = array<i64: 1, 32>}, {pipeline_mode = #tpu.pipeline_mode<synchronous>, transform_indices = @transform_3, window_bounds = array<i64: 32, 32>}, {pipeline_mode = #tpu.pipeline_mode<synchronous>, transform_indices = @transform_4, window_bounds = array<i64: 1, 32>}, {pipeline_mode = #tpu.pipeline_mode<synchronous>, transform_indices = @transform_5, window_bounds = array<i64: 96, 32>}, {pipeline_mode = #tpu.pipeline_mode<synchronous>, transform_indices = @transform_6, window_bounds = array<i64: 1, 32>}, {pipeline_mode = #tpu.pipeline_mode<synchronous>, transform_indices = @transform_7, window_bounds = array<i64: 32, 32>}, {pipeline_mode = #tpu.pipeline_mode<synchronous>, transform_indices = @transform_8, window_bounds = array<i64: 1, 32>}, {pipeline_mode = #tpu.pipeline_mode<synchronous>, transform_indices = @transform_9, window_bounds = array<i64: 96, 32>}, {pipeline_mode = #tpu.pipeline_mode<synchronous>, transform_indices = @transform_10, window_bounds = array<i64: 1, 32>}, {pipeline_mode = #tpu.pipeline_mode<synchronous>, transform_indices = @transform_11, window_bounds = array<i64: 32, 4>}, {pipeline_mode = #tpu.pipeline_mode<synchronous>, transform_indices = @transform_12, window_bounds = array<i64: 1, 4>}, {transform_indices = @transform_13, window_bounds = array<i64: 2, 16, 4>}]} {
    %c0 = arith.constant 0 : index
    %c0_0 = arith.constant 0 : index
    %c0_1 = arith.constant 0 : index
    %0 = vector.load %arg1[%c0, %c0_0, %c0_1] : memref<2x16x16xf32, #tpu.memory_space<vmem>>, vector<2x16x16xf32>
    %1 = vector.shape_cast %0 : vector<2x16x16xf32> to vector<32x16xf32>
    %2 = arith.truncf %1 : vector<32x16xf32> to vector<32x16xbf16>
    %c0_2 = arith.constant 0 : index
    %c0_3 = arith.constant 0 : index
    %3 = vector.load %arg2[%c0_2, %c0_3] : memref<16x32xbf16, #tpu.memory_space<vmem>>, vector<16x32xbf16>
    %cst = arith.constant dense<0.000000e+00> : vector<32x32xf32>
    %4 = tpu.matmul %2, %3, %cst {dimension_numbers = #tpu.dot_dimension_numbers<[1], [0], [0], [1], [0, 0, 1, 1], [], []>} : vector<32x16xbf16>, vector<16x32xbf16>, vector<32x32xf32> -> vector<32x32xf32>
    %c0_4 = arith.constant 0 : index
    %c0_5 = arith.constant 0 : index
    %5 = vector.load %arg3[%c0_4, %c0_5] : memref<1x32xf32, #tpu.memory_space<vmem>>, vector<1x32xf32>
    %6 = vector.broadcast %5 : vector<1x32xf32> to vector<32x32xf32>
    %7 = arith.addf %4, %6 : vector<32x32xf32>
    %cst_6 = arith.constant 0.000000e+00 : f32
    %8 = vector.broadcast %cst_6 : f32 to vector<32x32xf32>
    %9 = arith.maximumf %7, %8 : vector<32x32xf32>
    %10 = arith.truncf %9 : vector<32x32xf32> to vector<32x32xbf16>
    %c0_7 = arith.constant 0 : index
    %c0_8 = arith.constant 0 : index
    %11 = vector.load %arg4[%c0_7, %c0_8] : memref<32x32xbf16, #tpu.memory_space<vmem>>, vector<32x32xbf16>
    %cst_9 = arith.constant dense<0.000000e+00> : vector<32x32xf32>
    %12 = tpu.matmul %10, %11, %cst_9 {dimension_numbers = #tpu.dot_dimension_numbers<[1], [0], [0], [1], [0, 0, 1, 1], [], []>} : vector<32x32xbf16>, vector<32x32xbf16>, vector<32x32xf32> -> vector<32x32xf32>
    %c0_10 = arith.constant 0 : index
    %c0_11 = arith.constant 0 : index
    %13 = vector.load %arg5[%c0_10, %c0_11] : memref<1x32xf32, #tpu.memory_space<vmem>>, vector<1x32xf32>
    %14 = vector.broadcast %13 : vector<1x32xf32> to vector<32x32xf32>
    %15 = arith.addf %12, %14 : vector<32x32xf32>
    %cst_12 = arith.constant 0.000000e+00 : f32
    %16 = vector.broadcast %cst_12 : f32 to vector<32x32xf32>
    %17 = arith.maximumf %15, %16 : vector<32x32xf32>
    %18 = arith.truncf %17 : vector<32x32xf32> to vector<32x32xbf16>
    %19 = vector.shape_cast %18 : vector<32x32xbf16> to vector<2x16x32xbf16>
    %20 = vector.extract_strided_slice %19 {offsets = [0, 0, 0], sizes = [2, 1, 32], strides = [1, 1, 1]} : vector<2x16x32xbf16> to vector<2x1x32xbf16>
    %21 = vector.extract_strided_slice %19 {offsets = [0, 15, 0], sizes = [2, 1, 32], strides = [1, 1, 1]} : vector<2x16x32xbf16> to vector<2x1x32xbf16>
    %22 = tpu.concatenate %20, %19, %21 in 1 : vector<2x1x32xbf16>, vector<2x16x32xbf16>, vector<2x1x32xbf16> -> vector<2x18x32xbf16>
    %23 = vector.extract_strided_slice %22 {offsets = [0, 0, 0], sizes = [2, 16, 32], strides = [1, 1, 1]} : vector<2x18x32xbf16> to vector<2x16x32xbf16>
    %24 = vector.extract_strided_slice %22 {offsets = [0, 1, 0], sizes = [2, 16, 32], strides = [1, 1, 1]} : vector<2x18x32xbf16> to vector<2x16x32xbf16>
    %25 = vector.extract_strided_slice %22 {offsets = [0, 2, 0], sizes = [2, 16, 32], strides = [1, 1, 1]} : vector<2x18x32xbf16> to vector<2x16x32xbf16>
    %26 = tpu.concatenate %23, %24, %25 in 2 : vector<2x16x32xbf16>, vector<2x16x32xbf16>, vector<2x16x32xbf16> -> vector<2x16x96xbf16>
    %27 = vector.shape_cast %26 : vector<2x16x96xbf16> to vector<32x96xbf16>
    %c0_13 = arith.constant 0 : index
    %c0_14 = arith.constant 0 : index
    %28 = vector.load %arg6[%c0_13, %c0_14] : memref<96x32xbf16, #tpu.memory_space<vmem>>, vector<96x32xbf16>
    %cst_15 = arith.constant dense<0.000000e+00> : vector<32x32xf32>
    %29 = tpu.matmul %27, %28, %cst_15 {dimension_numbers = #tpu.dot_dimension_numbers<[1], [0], [0], [1], [0, 0, 1, 1], [], []>} : vector<32x96xbf16>, vector<96x32xbf16>, vector<32x32xf32> -> vector<32x32xf32>
    %c0_16 = arith.constant 0 : index
    %c0_17 = arith.constant 0 : index
    %30 = vector.load %arg7[%c0_16, %c0_17] : memref<1x32xf32, #tpu.memory_space<vmem>>, vector<1x32xf32>
    %31 = vector.broadcast %30 : vector<1x32xf32> to vector<32x32xf32>
    %32 = arith.addf %29, %31 : vector<32x32xf32>
    %cst_18 = arith.constant 0.000000e+00 : f32
    %33 = vector.broadcast %cst_18 : f32 to vector<32x32xf32>
    %34 = arith.maximumf %32, %33 : vector<32x32xf32>
    %35 = arith.truncf %34 : vector<32x32xf32> to vector<32x32xbf16>
    %c0_19 = arith.constant 0 : index
    %c0_20 = arith.constant 0 : index
    %36 = vector.load %arg8[%c0_19, %c0_20] : memref<32x32xbf16, #tpu.memory_space<vmem>>, vector<32x32xbf16>
    %cst_21 = arith.constant dense<0.000000e+00> : vector<32x32xf32>
    %37 = tpu.matmul %35, %36, %cst_21 {dimension_numbers = #tpu.dot_dimension_numbers<[1], [0], [0], [1], [0, 0, 1, 1], [], []>} : vector<32x32xbf16>, vector<32x32xbf16>, vector<32x32xf32> -> vector<32x32xf32>
    %c0_22 = arith.constant 0 : index
    %c0_23 = arith.constant 0 : index
    %38 = vector.load %arg9[%c0_22, %c0_23] : memref<1x32xf32, #tpu.memory_space<vmem>>, vector<1x32xf32>
    %39 = vector.broadcast %38 : vector<1x32xf32> to vector<32x32xf32>
    %40 = arith.addf %37, %39 : vector<32x32xf32>
    %cst_24 = arith.constant 0.000000e+00 : f32
    %41 = vector.broadcast %cst_24 : f32 to vector<32x32xf32>
    %42 = arith.maximumf %40, %41 : vector<32x32xf32>
    %43 = arith.truncf %42 : vector<32x32xf32> to vector<32x32xbf16>
    %44 = vector.shape_cast %43 : vector<32x32xbf16> to vector<2x16x32xbf16>
    %45 = vector.extract_strided_slice %44 {offsets = [0, 0, 0], sizes = [2, 1, 32], strides = [1, 1, 1]} : vector<2x16x32xbf16> to vector<2x1x32xbf16>
    %46 = vector.extract_strided_slice %44 {offsets = [0, 15, 0], sizes = [2, 1, 32], strides = [1, 1, 1]} : vector<2x16x32xbf16> to vector<2x1x32xbf16>
    %47 = tpu.concatenate %45, %44, %46 in 1 : vector<2x1x32xbf16>, vector<2x16x32xbf16>, vector<2x1x32xbf16> -> vector<2x18x32xbf16>
    %48 = vector.extract_strided_slice %47 {offsets = [0, 0, 0], sizes = [2, 16, 32], strides = [1, 1, 1]} : vector<2x18x32xbf16> to vector<2x16x32xbf16>
    %49 = vector.extract_strided_slice %47 {offsets = [0, 1, 0], sizes = [2, 16, 32], strides = [1, 1, 1]} : vector<2x18x32xbf16> to vector<2x16x32xbf16>
    %50 = vector.extract_strided_slice %47 {offsets = [0, 2, 0], sizes = [2, 16, 32], strides = [1, 1, 1]} : vector<2x18x32xbf16> to vector<2x16x32xbf16>
    %51 = tpu.concatenate %48, %49, %50 in 2 : vector<2x16x32xbf16>, vector<2x16x32xbf16>, vector<2x16x32xbf16> -> vector<2x16x96xbf16>
    %52 = vector.shape_cast %51 : vector<2x16x96xbf16> to vector<32x96xbf16>
    %c0_25 = arith.constant 0 : index
    %c0_26 = arith.constant 0 : index
    %53 = vector.load %arg10[%c0_25, %c0_26] : memref<96x32xbf16, #tpu.memory_space<vmem>>, vector<96x32xbf16>
    %cst_27 = arith.constant dense<0.000000e+00> : vector<32x32xf32>
    %54 = tpu.matmul %52, %53, %cst_27 {dimension_numbers = #tpu.dot_dimension_numbers<[1], [0], [0], [1], [0, 0, 1, 1], [], []>} : vector<32x96xbf16>, vector<96x32xbf16>, vector<32x32xf32> -> vector<32x32xf32>
    %c0_28 = arith.constant 0 : index
    %c0_29 = arith.constant 0 : index
    %55 = vector.load %arg11[%c0_28, %c0_29] : memref<1x32xf32, #tpu.memory_space<vmem>>, vector<1x32xf32>
    %56 = vector.broadcast %55 : vector<1x32xf32> to vector<32x32xf32>
    %57 = arith.addf %54, %56 : vector<32x32xf32>
    %cst_30 = arith.constant 0.000000e+00 : f32
    %58 = vector.broadcast %cst_30 : f32 to vector<32x32xf32>
    %59 = arith.maximumf %57, %58 : vector<32x32xf32>
    %60 = arith.truncf %59 : vector<32x32xf32> to vector<32x32xbf16>
    %c0_31 = arith.constant 0 : index
    %c0_32 = arith.constant 0 : index
    %61 = vector.load %arg12[%c0_31, %c0_32] : memref<32x4xbf16, #tpu.memory_space<vmem>>, vector<32x4xbf16>
    %cst_33 = arith.constant dense<0.000000e+00> : vector<32x4xf32>
    %62 = tpu.matmul %60, %61, %cst_33 {dimension_numbers = #tpu.dot_dimension_numbers<[1], [0], [0], [1], [0, 0, 1, 1], [], []>} : vector<32x32xbf16>, vector<32x4xbf16>, vector<32x4xf32> -> vector<32x4xf32>
    %c0_34 = arith.constant 0 : index
    %c0_35 = arith.constant 0 : index
    %63 = vector.load %arg13[%c0_34, %c0_35] : memref<1x4xf32, #tpu.memory_space<vmem>>, vector<1x4xf32>
    %64 = vector.broadcast %63 : vector<1x4xf32> to vector<32x4xf32>
    %65 = arith.addf %62, %64 : vector<32x4xf32>
    %66 = vector.shape_cast %65 : vector<32x4xf32> to vector<2x16x4xf32>
    %c0_36 = arith.constant 0 : index
    %c0_37 = arith.constant 0 : index
    %c0_38 = arith.constant 0 : index
    %67 = vector.load %arg14[%c0_36, %c0_37, %c0_38] : memref<2x16x4xf32, #tpu.memory_space<vmem>>, vector<2x16x4xf32>
    tpu.vector_store %arg14[%c0_36, %c0_37, %c0_38], %66 {strides = array<i32>} : memref<2x16x4xf32, #tpu.memory_space<vmem>>, vector<2x16x4xf32>,
    return
  }
  func.func @transform_0(%arg0: i32) -> (i32, i32, i32) {
    %c0_i32 = arith.constant 0 : i32
    %c0_i32_0 = arith.constant 0 : i32
    %c0_i32_1 = arith.constant 0 : i32
    return %arg0, %c0_i32, %c0_i32_0 : i32, i32, i32
  }
  func.func @transform_1(%arg0: i32) -> (i32, i32) {
    %c0_i32 = arith.constant 0 : i32
    %c0_i32_0 = arith.constant 0 : i32
    %c0_i32_1 = arith.constant 0 : i32
    return %c0_i32, %c0_i32_0 : i32, i32
  }
  func.func @transform_2(%arg0: i32) -> (i32, i32) {
    %c0_i32 = arith.constant 0 : i32
    %c0_i32_0 = arith.constant 0 : i32
    %c0_i32_1 = arith.constant 0 : i32
    return %c0_i32, %c0_i32_0 : i32, i32
  }
  func.func @transform_3(%arg0: i32) -> (i32, i32) {
    %c0_i32 = arith.constant 0 : i32
    %c0_i32_0 = arith.constant 0 : i32
    %c0_i32_1 = arith.constant 0 : i32
    return %c0_i32, %c0_i32_0 : i32, i32
  }
  func.func @transform_4(%arg0: i32) -> (i32, i32) {
    %c0_i32 = arith.constant 0 : i32
    %c0_i32_0 = arith.constant 0 : i32
    %c0_i32_1 = arith.constant 0 : i32
    return %c0_i32, %c0_i32_0 : i32, i32
  }
  func.func @transform_5(%arg0: i32) -> (i32, i32) {
    %c0_i32 = arith.constant 0 : i32
    %c0_i32_0 = arith.constant 0 : i32
    %c0_i32_1 = arith.constant 0 : i32
    return %c0_i32, %c0_i32_0 : i32, i32
  }
  func.func @transform_6(%arg0: i32) -> (i32, i32) {
    %c0_i32 = arith.constant 0 : i32
    %c0_i32_0 = arith.constant 0 : i32
    %c0_i32_1 = arith.constant 0 : i32
    return %c0_i32, %c0_i32_0 : i32, i32
  }
  func.func @transform_7(%arg0: i32) -> (i32, i32) {
    %c0_i32 = arith.constant 0 : i32
    %c0_i32_0 = arith.constant 0 : i32
    %c0_i32_1 = arith.constant 0 : i32
    return %c0_i32, %c0_i32_0 : i32, i32
  }
  func.func @transform_8(%arg0: i32) -> (i32, i32) {
    %c0_i32 = arith.constant 0 : i32
    %c0_i32_0 = arith.constant 0 : i32
    %c0_i32_1 = arith.constant 0 : i32
    return %c0_i32, %c0_i32_0 : i32, i32
  }
  func.func @transform_9(%arg0: i32) -> (i32, i32) {
    %c0_i32 = arith.constant 0 : i32
    %c0_i32_0 = arith.constant 0 : i32
    %c0_i32_1 = arith.constant 0 : i32
    return %c0_i32, %c0_i32_0 : i32, i32
  }
  func.func @transform_10(%arg0: i32) -> (i32, i32) {
    %c0_i32 = arith.constant 0 : i32
    %c0_i32_0 = arith.constant 0 : i32
    %c0_i32_1 = arith.constant 0 : i32
    return %c0_i32, %c0_i32_0 : i32, i32
  }
  func.func @transform_11(%arg0: i32) -> (i32, i32) {
    %c0_i32 = arith.constant 0 : i32
    %c0_i32_0 = arith.constant 0 : i32
    %c0_i32_1 = arith.constant 0 : i32
    return %c0_i32, %c0_i32_0 : i32, i32
  }
  func.func @transform_12(%arg0: i32) -> (i32, i32) {
    %c0_i32 = arith.constant 0 : i32
    %c0_i32_0 = arith.constant 0 : i32
    %c0_i32_1 = arith.constant 0 : i32
    return %c0_i32, %c0_i32_0 : i32, i32
  }
  func.func @transform_13(%arg0: i32) -> (i32, i32, i32) {
    %c0_i32 = arith.constant 0 : i32
    %c0_i32_0 = arith.constant 0 : i32
    %c0_i32_1 = arith.constant 0 : i32
    return %arg0, %c0_i32, %c0_i32_0 : i32, i32, i32
  }
}

</mosaic_0001>

<llo_original>
// kernel: mlp_conv_forward.1
$region0: #{mlp_conv_forward.1}
  #allocation0 [shape = 'u32[]', space=smem, size = 0x4, offset = 0x4, fixed_abs, tag = 'smem constant byte address 0x4 - core index']
  #allocation1 [shape = 'u32[144,128]{1,0:T(1,128)}', space=vmem, size = 0x12000, scoped, tag = 'internal scratch']
  %s0 = inlined_call_operand.vmem [shape: f32[2,16,16], index: 0, kind: input, shape index: {}]
  %s1 = inlined_call_operand.vmem [shape: bf16[16,32], index: 1, kind: input, shape index: {}]
  %s2 = inlined_call_operand.vmem [shape: f32[1,32], index: 2, kind: input, shape index: {}]
  %s3 = inlined_call_operand.vmem [shape: bf16[32,32], index: 3, kind: input, shape index: {}]
  %s4 = inlined_call_operand.vmem [shape: f32[1,32], index: 4, kind: input, shape index: {}]
  %s5 = inlined_call_operand.vmem [shape: bf16[96,32], index: 5, kind: input, shape index: {}]
  %s6 = inlined_call_operand.vmem [shape: f32[1,32], index: 6, kind: input, shape index: {}]
  %s7 = inlined_call_operand.vmem [shape: bf16[32,32], index: 7, kind: input, shape index: {}]
  %s8 = inlined_call_operand.vmem [shape: f32[1,32], index: 8, kind: input, shape index: {}]
  %s9 = inlined_call_operand.vmem [shape: bf16[96,32], index: 9, kind: input, shape index: {}]
  %s10 = inlined_call_operand.vmem [shape: f32[1,32], index: 10, kind: input, shape index: {}]
  %s11 = inlined_call_operand.vmem [shape: bf16[32,4], index: 11, kind: input, shape index: {}]
  %s12 = inlined_call_operand.vmem [shape: f32[1,4], index: 12, kind: input, shape index: {}]
  %s13 = inlined_call_operand.vmem [shape: f32[2,16,4], index: 13, kind: output, shape index: {}]
  %s14 = sld [smem:[#allocation0]]
  $region62: #{mlp_conv_forward.1} parent=0
    _
  %s16 = ssub.s32 1, %s14
  %s17 = scalar_select 0, %s16, %s14
  // Predicated region
  $region2: #{mlp_conv_forward.1} parent=0 // pred_check
    _
  $region3: #{mlp_conv_forward.1} parent=0 // pred_check_branch
    %19 = sbr.rel (0) target = $region5
  $region4: #{mlp_conv_forward.1} parent=0 // pred_region
    _
  $region5: #{mlp_conv_forward.1} parent=0 // pred_fallthru
    _
  // Predicated region
  $region6: #{mlp_conv_forward.1} parent=0 // pred_check
    _
  $region7: #{mlp_conv_forward.1} parent=0 // pred_check_branch
    %21 = sbr.rel (0) target = $region9
  $region8: #{mlp_conv_forward.1} parent=0 // pred_region
    _
  $region9: #{mlp_conv_forward.1} parent=0 // pred_fallthru
    _
  // Predicated region
  $region10: #{mlp_conv_forward.1} parent=0 // pred_check
    _
  $region11: #{mlp_conv_forward.1} parent=0 // pred_check_branch
    %23 = sbr.rel (0) target = $region13
  $region12: #{mlp_conv_forward.1} parent=0 // pred_region
    _
  $region13: #{mlp_conv_forward.1} parent=0 // pred_fallthru
    _
  // Predicated region
  $region14: #{mlp_conv_forward.1} parent=0 // pred_check
    _
  $region15: #{mlp_conv_forward.1} parent=0 // pred_check_branch
    %25 = sbr.rel (0) target = $region17
  $region16: #{mlp_conv_forward.1} parent=0 // pred_region
    _
  $region17: #{mlp_conv_forward.1} parent=0 // pred_fallthru
    _
  // Predicated region
  $region18: #{mlp_conv_forward.1} parent=0 // pred_check
    _
  $region19: #{mlp_conv_forward.1} parent=0 // pred_check_branch
    %27 = sbr.rel (0) target = $region21
  $region20: #{mlp_conv_forward.1} parent=0 // pred_region
    _
  $region21: #{mlp_conv_forward.1} parent=0 // pred_fallthru
    _
  // Predicated region
  $region22: #{mlp_conv_forward.1} parent=0 // pred_check
    _
  $region23: #{mlp_conv_forward.1} parent=0 // pred_check_branch
    %29 = sbr.rel (0) target = $region25
  $region24: #{mlp_conv_forward.1} parent=0 // pred_region
    _
  $region25: #{mlp_conv_forward.1} parent=0 // pred_fallthru
    _
  // Predicated region
  $region26: #{mlp_conv_forward.1} parent=0 // pred_check
    _
  $region27: #{mlp_conv_forward.1} parent=0 // pred_check_branch
    %31 = sbr.rel (0) target = $region29
  $region28: #{mlp_conv_forward.1} parent=0 // pred_region
    _
  $region29: #{mlp_conv_forward.1} parent=0 // pred_fallthru
    _
  // Predicated region
  $region30: #{mlp_conv_forward.1} parent=0 // pred_check
    _
  $region31: #{mlp_conv_forward.1} parent=0 // pred_check_branch
    %33 = sbr.rel (0) target = $region33
  $region32: #{mlp_conv_forward.1} parent=0 // pred_region
    _
  $region33: #{mlp_conv_forward.1} parent=0 // pred_fallthru
    _
  // Predicated region
  $region34: #{mlp_conv_forward.1} parent=0 // pred_check
    _
  $region35: #{mlp_conv_forward.1} parent=0 // pred_check_branch
    %35 = sbr.rel (0) target = $region37
  $region36: #{mlp_conv_forward.1} parent=0 // pred_region
    _
  $region37: #{mlp_conv_forward.1} parent=0 // pred_fallthru
    _
  // Predicated region
  $region38: #{mlp_conv_forward.1} parent=0 // pred_check
    _
  $region39: #{mlp_conv_forward.1} parent=0 // pred_check_branch
    %37 = sbr.rel (0) target = $region41
  $region40: #{mlp_conv_forward.1} parent=0 // pred_region
    _
  $region41: #{mlp_conv_forward.1} parent=0 // pred_fallthru
    _
  // Predicated region
  $region42: #{mlp_conv_forward.1} parent=0 // pred_check
    _
  $region43: #{mlp_conv_forward.1} parent=0 // pred_check_branch
    %39 = sbr.rel (0) target = $region45
  $region44: #{mlp_conv_forward.1} parent=0 // pred_region
    _
  $region45: #{mlp_conv_forward.1} parent=0 // pred_fallthru
    _
  // Predicated region
  $region46: #{mlp_conv_forward.1} parent=0 // pred_check
    _
  $region47: #{mlp_conv_forward.1} parent=0 // pred_check_branch
    %41 = sbr.rel (0) target = $region49
  $region48: #{mlp_conv_forward.1} parent=0 // pred_region
    _
  $region49: #{mlp_conv_forward.1} parent=0 // pred_fallthru
    _
  // Predicated region
  $region50: #{mlp_conv_forward.1} parent=0 // pred_check
    _
  $region51: #{mlp_conv_forward.1} parent=0 // pred_check_branch
    %43 = sbr.rel (0) target = $region53
  $region52: #{mlp_conv_forward.1} parent=0 // pred_region
    _
  $region53: #{mlp_conv_forward.1} parent=0 // pred_fallthru
    _
  %v45 = vld [vmem:[%s0] sm:$0xff]
  %v46 = vld [vmem:[%s0 + $0x8] sm:$0xff]
  %v47 = vld [vmem:[%s0 + $0x10] sm:$0xff]
  %v48 = vld [vmem:[%s0 + $0x18] sm:$0xff]
  %v49 = vpack.c.bf16 %v46, %v45
  %v50 = vpack.c.bf16 %v48, %v47
  %v51 = vld [vmem:[%s1] sm:$0xf]
  %v52 = vld [vmem:[%s1 + $0x4] sm:$0xf]
  %v53 = vld [vmem:[%s2] sm:$0x1]
  %v55 = vlaneseq
  %v56 = vshrl.u32 %v55, 7
  %v57 = vsub.s32 0, %v56
  %v58 = vrot.slane %v53, %v57
  %v62 = vunpack.c.l.b16 %v51
  %v63 = vunpack.c.l.b16 %v52
  %v64 = vpack.c.b16 %v63, %v62
  %vm66 = vcmask 130048
  %v68 = vsel %vm66, %v49, 0
  %v71 = vsel %vm66, %v50, 0
  %73 = vmatprep.subr.bf16.mxu0 0
  %74 = vmatpush1.bf16.msra.mxu0 0
  %75 = vmatprep.subr.bf16.mxu0 0
  %76 = vmatpush1.bf16.msra.mxu0 0
  %77 = vmatprep.subr.bf16.mxu0 0
  %78 = vmatpush1.bf16.msra.mxu0 0
  %79 = vmatprep.subr.bf16.mxu0 0
  %80 = vmatpush1.bf16.msra.mxu0 0
  %81 = vmatprep.subr.bf16.mxu0 0
  %82 = vmatpush1.bf16.msra.mxu0 0
  %83 = vmatprep.subr.bf16.mxu0 0
  %84 = vmatpush1.bf16.msra.mxu0 0
  %85 = vmatprep.subr.bf16.mxu0 0
  %86 = vmatpush1.bf16.msra.mxu0 0
  %87 = vmatprep.subr.bf16.mxu0 0
  %88 = vmatpush1.bf16.msra.mxu0 %v64
  %89 = vmatprep.subr.bf16.mxu0 0
  %90 = vmatpush2.bf16.msra.mxu0 0
  %91 = vmatprep.subr.bf16.mxu0 0
  %92 = vmatpush2.bf16.msra.mxu0 0
  %93 = vmatprep.subr.bf16.mxu0 0
  %94 = vmatpush2.bf16.msra.mxu0 0
  %95 = vmatprep.subr.bf16.mxu0 0
  %96 = vmatpush2.bf16.msra.mxu0 0
  %97 = vmatprep.subr.bf16.mxu0 0
  %98 = vmatpush2.bf16.msra.mxu0 0
  %99 = vmatprep.subr.bf16.mxu0 0
  %100 = vmatpush2.bf16.msra.mxu0 0
  %101 = vmatprep.subr.bf16.mxu0 0
  %102 = vmatpush2.bf16.msra.mxu0 0
  %103 = vmatprep.subr.bf16.mxu0 0
  %104 = vmatpush2.bf16.msra.mxu0 0
  %105 = vmatprep.mubr.bf16.mxu0 0
  %106 = vmatmul.mubr.bf16.gmra.mxu0 %v68
  %v107 = vpop.f32.mrf.mxu0
  %v108 = vadd.f32 %v58, %v107
  %v109 = vpop.f32.mrf.mxu0
  %v110 = vpop.f32.mrf.mxu0
  %v111 = vadd.f32 %v58, %v110
  %v112 = vpop.f32.mrf.mxu0
  %113 = vmatprep.mubr.bf16.mxu0 0
  %114 = vmatmul.mubr.bf16.gmra.mxu0 %v71
  %v115 = vpop.f32.mrf.mxu0
  %v116 = vadd.f32 %v58, %v115
  %v117 = vpop.f32.mrf.mxu0
  %v118 = vpop.f32.mrf.mxu0
  %v119 = vadd.f32 %v58, %v118
  %v120 = vpop.f32.mrf.mxu0
  %121 = vdwg.mxu0
  %v122 = vmax.f32 %v108, 0.0
  %v123 = vmax.f32 %v111, 0.0
  %v124 = vmax.f32 %v116, 0.0
  %v125 = vmax.f32 %v119, 0.0
  %v126 = vpack.c.bf16 %v123, %v122
  %v127 = vpack.c.bf16 %v125, %v124
  %v128 = vld [vmem:[%s3] sm:$0xf]
  %v129 = vld [vmem:[%s3 + $0x4] sm:$0xf]
  %v130 = vld [vmem:[%s3 + $0x8] sm:$0xf]
  %v131 = vld [vmem:[%s3 + $0xc] sm:$0xf]
  %v132 = vld [vmem:[%s4] sm:$0x1]
  %v134 = vlaneseq
  %v135 = vshrl.u32 %v134, 7
  %v136 = vsub.s32 0, %v135
  %v137 = vrot.slane %v132, %v136
  %v143 = vunpack.c.l.b16 %v128
  %v144 = vunpack.c.l.b16 %v129
  %v145 = vunpack.c.l.b16 %v130
  %v146 = vunpack.c.l.b16 %v131
  %v147 = vpack.c.b16 %v144, %v143
  %v148 = vpack.c.b16 %v146, %v145
  %vm151 = vcmask 261120
  %v153 = vsel %vm151, %v126, 0
  %v156 = vsel %vm151, %v127, 0
  %158 = vmatprep.subr.bf16.mxu0 0
  %159 = vmatpush1.bf16.msra.mxu0 0
  %160 = vmatprep.subr.bf16.mxu0 0
  %161 = vmatpush1.bf16.msra.mxu0 0
  %162 = vmatprep.subr.bf16.mxu0 0
  %163 = vmatpush1.bf16.msra.mxu0 0
  %164 = vmatprep.subr.bf16.mxu0 0
  %165 = vmatpush1.bf16.msra.mxu0 0
  %166 = vmatprep.subr.bf16.mxu0 0
  %167 = vmatpush1.bf16.msra.mxu0 0
  %168 = vmatprep.subr.bf16.mxu0 0
  %169 = vmatpush1.bf16.msra.mxu0 0
  %170 = vmatprep.subr.bf16.mxu0 0
  %171 = vmatpush1.bf16.msra.mxu0 %v148
  %172 = vmatprep.subr.bf16.mxu0 0
  %173 = vmatpush1.bf16.msra.mxu0 %v147
  %174 = vmatprep.subr.bf16.mxu0 0
  %175 = vmatpush2.bf16.msra.mxu0 0
  %176 = vmatprep.subr.bf16.mxu0 0
  %177 = vmatpush2.bf16.msra.mxu0 0
  %178 = vmatprep.subr.bf16.mxu0 0
  %179 = vmatpush2.bf16.msra.mxu0 0
  %180 = vmatprep.subr.bf16.mxu0 0
  %181 = vmatpush2.bf16.msra.mxu0 0
  %182 = vmatprep.subr.bf16.mxu0 0
  %183 = vmatpush2.bf16.msra.mxu0 0
  %184 = vmatprep.subr.bf16.mxu0 0
  %185 = vmatpush2.bf16.msra.mxu0 0
  %186 = vmatprep.subr.bf16.mxu0 0
  %187 = vmatpush2.bf16.msra.mxu0 0
  %188 = vmatprep.subr.bf16.mxu0 0
  %189 = vmatpush2.bf16.msra.mxu0 0
  %190 = vmatprep.mubr.bf16.mxu0 0
  %191 = vmatmul.mubr.bf16.gmra.mxu0 %v153
  %v192 = vpop.f32.mrf.mxu0
  %v193 = vadd.f32 %v137, %v192
  %v194 = vpop.f32.mrf.mxu0
  %v195 = vpop.f32.mrf.mxu0
  %v196 = vadd.f32 %v137, %v195
  %v197 = vpop.f32.mrf.mxu0
  %198 = vmatprep.mubr.bf16.mxu0 0
  %199 = vmatmul.mubr.bf16.gmra.mxu0 %v156
  %v200 = vpop.f32.mrf.mxu0
  %v201 = vadd.f32 %v137, %v200
  %v202 = vpop.f32.mrf.mxu0
  %v203 = vpop.f32.mrf.mxu0
  %v204 = vadd.f32 %v137, %v203
  %v205 = vpop.f32.mrf.mxu0
  %206 = vdwg.mxu0
  %v207 = vmax.f32 %v193, 0.0
  %v208 = vmax.f32 %v196, 0.0
  %v209 = vmax.f32 %v201, 0.0
  %v210 = vmax.f32 %v204, 0.0
  %v211 = vpack.c.bf16 %v208, %v207
  %v212 = vpack.c.bf16 %v210, %v209
  %v214 = vshrl.u32 %v211, 16
  %v216 = vrot.slane %v214, 7
  %v217 = vshll.u32 %v211, 16
  %v219 = vor.u32 %v216, %v217
  %v221 = vshrl.u32 %v212, 16
  %v223 = vrot.slane %v221, 7
  %v224 = vshll.u32 %v212, 16
  %v226 = vor.u32 %v223, %v224
  %v233 = vrot.slane %v211, 7
  %v234 = vrot.slane %v212, 7
  %vm237 = vcmask 1040384
  %vm238 = vsmask.f32 256
  %vm239 = vmand %vm237, %vm238
  %v240 = vsel %vm239, %v211, %v219
  %v241 = vsel %vm239, %v212, %v226
  %v242 = vsel %vm239, %v216, %v233
  %v243 = vsel %vm239, %v223, %v234
  %vm244 = vsmask.f32 7424
  %v246 = vshrl.u32 %v240, 16
  %v248 = vshll.u32 %v240, 16
  %v250 = vrot.slane %v248, 1
  %v251 = vor.u32 %v246, %v250
  %v253 = vshll.u32 %v242, 16
  %v255 = vrot.slane %v253, 1
  %v256 = vsel %vm244, %v251, %v255
  %v258 = vshrl.u32 %v241, 16
  %v260 = vshll.u32 %v241, 16
  %v262 = vrot.slane %v260, 1
  %v263 = vor.u32 %v258, %v262
  %v265 = vshll.u32 %v243, 16
  %v267 = vrot.slane %v265, 1
  %v268 = vsel %vm244, %v263, %v267
  %269 = vrot.lane.b32.xlu0 %v256, 32
  %v270 = vpop.permute.xlu0 %269
  %271 = vrot.lane.b32.xlu0 %v268, 32
  %v272 = vpop.permute.xlu0 %271
  %vm277 = vcmask 1046528
  %v278 = vrot.slane %v240, 1
  %v279 = vrot.slane %v242, 1
  %v280 = vsel %vm277, %v278, %v279
  %v281 = vrot.slane %v241, 1
  %v282 = vrot.slane %v243, 1
  %v283 = vsel %vm277, %v281, %v282
  %284 = vrot.lane.b32.xlu0 %v280, 64
  %v285 = vpop.permute.xlu0 %284
  %286 = vrot.lane.b32.xlu0 %v283, 64
  %v287 = vpop.permute.xlu0 %286
  %v289 = vsel %vm151, %v240, %v270
  %v291 = vsel %vm151, %v241, %v272
  %vm292 = vcmask 523264
  %v294 = vsel %vm292, %v289, %v285
  %v296 = vsel %vm292, %v291, %v287
  %v297 = vld [vmem:[%s5] sm:$0xf]
  %v298 = vld [vmem:[%s5 + $0x4] sm:$0xf]
  %v299 = vld [vmem:[%s5 + $0x8] sm:$0xf]
  %v300 = vld [vmem:[%s5 + $0xc] sm:$0xf]
  %v301 = vld [vmem:[%s5 + $0x10] sm:$0xf]
  %v302 = vld [vmem:[%s5 + $0x14] sm:$0xf]
  %v303 = vld [vmem:[%s5 + $0x18] sm:$0xf]
  %v304 = vld [vmem:[%s5 + $0x1c] sm:$0xf]
  %v305 = vld [vmem:[%s5 + $0x20] sm:$0xf]
  %v306 = vld [vmem:[%s5 + $0x24] sm:$0xf]
  %v307 = vld [vmem:[%s5 + $0x28] sm:$0xf]
  %v308 = vld [vmem:[%s5 + $0x2c] sm:$0xf]
  %v309 = vld [vmem:[%s6] sm:$0x1]
  %v311 = vlaneseq
  %v312 = vshrl.u32 %v311, 7
  %v313 = vsub.s32 0, %v312
  %v314 = vrot.slane %v309, %v313
  %v328 = vunpack.c.l.b16 %v297
  %v329 = vunpack.c.l.b16 %v298
  %v330 = vunpack.c.l.b16 %v299
  %v331 = vunpack.c.l.b16 %v300
  %v332 = vunpack.c.l.b16 %v301
  %v333 = vunpack.c.l.b16 %v302
  %v334 = vunpack.c.l.b16 %v303
  %v335 = vunpack.c.l.b16 %v304
  %v336 = vunpack.c.l.b16 %v305
  %v337 = vunpack.c.l.b16 %v306
  %v338 = vunpack.c.l.b16 %v307
  %v339 = vunpack.c.l.b16 %v308
  %v340 = vpack.c.b16 %v329, %v328
  %v341 = vpack.c.b16 %v331, %v330
  %v342 = vpack.c.b16 %v333, %v332
  %v343 = vpack.c.b16 %v335, %v334
  %v344 = vpack.c.b16 %v337, %v336
  %v345 = vpack.c.b16 %v339, %v338
  %vm352 = vcmask 785408
  %v353 = vsel %vm352, %v294, 0
  %v355 = vsel %vm352, %v296, 0
  %357 = vmatprep.subr.bf16.mxu0 0
  %358 = vmatpush1.bf16.msra.mxu0 0
  %359 = vmatprep.subr.bf16.mxu0 0
  %360 = vmatpush1.bf16.msra.mxu0 0
  %361 = vmatprep.subr.bf16.mxu0 0
  %362 = vmatpush1.bf16.msra.mxu0 %v345
  %363 = vmatprep.subr.bf16.mxu0 0
  %364 = vmatpush1.bf16.msra.mxu0 %v344
  %365 = vmatprep.subr.bf16.mxu0 0
  %366 = vmatpush1.bf16.msra.mxu0 %v343
  %367 = vmatprep.subr.bf16.mxu0 0
  %368 = vmatpush1.bf16.msra.mxu0 %v342
  %369 = vmatprep.subr.bf16.mxu0 0
  %370 = vmatpush1.bf16.msra.mxu0 %v341
  %371 = vmatprep.subr.bf16.mxu0 0
  %372 = vmatpush1.bf16.msra.mxu0 %v340
  %373 = vmatprep.subr.bf16.mxu0 0
  %374 = vmatpush2.bf16.msra.mxu0 0
  %375 = vmatprep.subr.bf16.mxu0 0
  %376 = vmatpush2.bf16.msra.mxu0 0
  %377 = vmatprep.subr.bf16.mxu0 0
  %378 = vmatpush2.bf16.msra.mxu0 0
  %379 = vmatprep.subr.bf16.mxu0 0
  %380 = vmatpush2.bf16.msra.mxu0 0
  %381 = vmatprep.subr.bf16.mxu0 0
  %382 = vmatpush2.bf16.msra.mxu0 0
  %383 = vmatprep.subr.bf16.mxu0 0
  %384 = vmatpush2.bf16.msra.mxu0 0
  %385 = vmatprep.subr.bf16.mxu0 0
  %386 = vmatpush2.bf16.msra.mxu0 0
  %387 = vmatprep.subr.bf16.mxu0 0
  %388 = vmatpush2.bf16.msra.mxu0 0
  %389 = vmatprep.mubr.bf16.mxu0 0
  %390 = vmatmul.mubr.bf16.gmra.mxu0 %v353
  %v391 = vpop.f32.mrf.mxu0
  %v392 = vadd.f32 %v314, %v391
  %v393 = vpop.f32.mrf.mxu0
  %v394 = vpop.f32.mrf.mxu0
  %v395 = vadd.f32 %v314, %v394
  %v396 = vpop.f32.mrf.mxu0
  %397 = vmatprep.mubr.bf16.mxu0 0
  %398 = vmatmul.mubr.bf16.gmra.mxu0 %v355
  %v399 = vpop.f32.mrf.mxu0
  %v400 = vadd.f32 %v314, %v399
  %v401 = vpop.f32.mrf.mxu0
  %v402 = vpop.f32.mrf.mxu0
  %v403 = vadd.f32 %v314, %v402
  %v404 = vpop.f32.mrf.mxu0
  %405 = vdwg.mxu0
  %v406 = vmax.f32 %v392, 0.0
  %v407 = vmax.f32 %v395, 0.0
  %v408 = vmax.f32 %v400, 0.0
  %v409 = vmax.f32 %v403, 0.0
  %v410 = vpack.c.bf16 %v407, %v406
  %v411 = vpack.c.bf16 %v409, %v408
  %v412 = vld [vmem:[%s7] sm:$0xf]
  %v413 = vld [vmem:[%s7 + $0x4] sm:$0xf]
  %v414 = vld [vmem:[%s7 + $0x8] sm:$0xf]
  %v415 = vld [vmem:[%s7 + $0xc] sm:$0xf]
  %v416 = vld [vmem:[%s8] sm:$0x1]
  %v418 = vlaneseq
  %v419 = vshrl.u32 %v418, 7
  %v420 = vsub.s32 0, %v419
  %v421 = vrot.slane %v416, %v420
  %v427 = vunpack.c.l.b16 %v412
  %v428 = vunpack.c.l.b16 %v413
  %v429 = vunpack.c.l.b16 %v414
  %v430 = vunpack.c.l.b16 %v415
  %v431 = vpack.c.b16 %v428, %v427
  %v432 = vpack.c.b16 %v430, %v429
  %v436 = vsel %vm151, %v410, 0
  %v439 = vsel %vm151, %v411, 0
  %441 = vmatprep.subr.bf16.mxu0 0
  %442 = vmatpush1.bf16.msra.mxu0 0
  %443 = vmatprep.subr.bf16.mxu0 0
  %444 = vmatpush1.bf16.msra.mxu0 0
  %445 = vmatprep.subr.bf16.mxu0 0
  %446 = vmatpush1.bf16.msra.mxu0 0
  %447 = vmatprep.subr.bf16.mxu0 0
  %448 = vmatpush1.bf16.msra.mxu0 0
  %449 = vmatprep.subr.bf16.mxu0 0
  %450 = vmatpush1.bf16.msra.mxu0 0
  %451 = vmatprep.subr.bf16.mxu0 0
  %452 = vmatpush1.bf16.msra.mxu0 0
  %453 = vmatprep.subr.bf16.mxu0 0
  %454 = vmatpush1.bf16.msra.mxu0 %v432
  %455 = vmatprep.subr.bf16.mxu0 0
  %456 = vmatpush1.bf16.msra.mxu0 %v431
  %457 = vmatprep.subr.bf16.mxu0 0
  %458 = vmatpush2.bf16.msra.mxu0 0
  %459 = vmatprep.subr.bf16.mxu0 0
  %460 = vmatpush2.bf16.msra.mxu0 0
  %461 = vmatprep.subr.bf16.mxu0 0
  %462 = vmatpush2.bf16.msra.mxu0 0
  %463 = vmatprep.subr.bf16.mxu0 0
  %464 = vmatpush2.bf16.msra.mxu0 0
  %465 = vmatprep.subr.bf16.mxu0 0
  %466 = vmatpush2.bf16.msra.mxu0 0
  %467 = vmatprep.subr.bf16.mxu0 0
  %468 = vmatpush2.bf16.msra.mxu0 0
  %469 = vmatprep.subr.bf16.mxu0 0
  %470 = vmatpush2.bf16.msra.mxu0 0
  %471 = vmatprep.subr.bf16.mxu0 0
  %472 = vmatpush2.bf16.msra.mxu0 0
  %473 = vmatprep.mubr.bf16.mxu0 0
  %474 = vmatmul.mubr.bf16.gmra.mxu0 %v436
  %v475 = vpop.f32.mrf.mxu0
  %v476 = vadd.f32 %v421, %v475
  %v477 = vpop.f32.mrf.mxu0
  %v478 = vpop.f32.mrf.mxu0
  %v479 = vadd.f32 %v421, %v478
  %v480 = vpop.f32.mrf.mxu0
  %481 = vmatprep.mubr.bf16.mxu0 0
  %482 = vmatmul.mubr.bf16.gmra.mxu0 %v439
  %v483 = vpop.f32.mrf.mxu0
  %v484 = vadd.f32 %v421, %v483
  %v485 = vpop.f32.mrf.mxu0
  %v486 = vpop.f32.mrf.mxu0
  %v487 = vadd.f32 %v421, %v486
  %v488 = vpop.f32.mrf.mxu0
  %489 = vdwg.mxu0
  %v490 = vmax.f32 %v476, 0.0
  %v491 = vmax.f32 %v479, 0.0
  %v492 = vmax.f32 %v484, 0.0
  %v493 = vmax.f32 %v487, 0.0
  %v494 = vpack.c.bf16 %v491, %v490
  %v495 = vpack.c.bf16 %v493, %v492
  %v497 = vshrl.u32 %v494, 16
  %v499 = vrot.slane %v497, 7
  %v500 = vshll.u32 %v494, 16
  %v502 = vor.u32 %v499, %v500
  %v504 = vshrl.u32 %v495, 16
  %v506 = vrot.slane %v504, 7
  %v507 = vshll.u32 %v495, 16
  %v509 = vor.u32 %v506, %v507
  %v516 = vrot.slane %v494, 7
  %v517 = vrot.slane %v495, 7
  %v520 = vsel %vm239, %v494, %v502
  %v521 = vsel %vm239, %v495, %v509
  %v522 = vsel %vm239, %v499, %v516
  %v523 = vsel %vm239, %v506, %v517
  %v525 = vshrl.u32 %v520, 16
  %v527 = vshll.u32 %v520, 16
  %v529 = vrot.slane %v527, 1
  %v530 = vor.u32 %v525, %v529
  %v532 = vshll.u32 %v522, 16
  %v534 = vrot.slane %v532, 1
  %v535 = vsel %vm244, %v530, %v534
  %v537 = vshrl.u32 %v521, 16
  %v539 = vshll.u32 %v521, 16
  %v541 = vrot.slane %v539, 1
  %v542 = vor.u32 %v537, %v541
  %v544 = vshll.u32 %v523, 16
  %v546 = vrot.slane %v544, 1
  %v547 = vsel %vm244, %v542, %v546
  %548 = vrot.lane.b32.xlu0 %v535, 32
  %v549 = vpop.permute.xlu0 %548
  %550 = vrot.lane.b32.xlu0 %v547, 32
  %v551 = vpop.permute.xlu0 %550
  %v556 = vrot.slane %v520, 1
  %v557 = vrot.slane %v522, 1
  %v558 = vsel %vm277, %v556, %v557
  %v559 = vrot.slane %v521, 1
  %v560 = vrot.slane %v523, 1
  %v561 = vsel %vm277, %v559, %v560
  %562 = vrot.lane.b32.xlu0 %v558, 64
  %v563 = vpop.permute.xlu0 %562
  %564 = vrot.lane.b32.xlu0 %v561, 64
  %v565 = vpop.permute.xlu0 %564
  %v567 = vsel %vm151, %v520, %v549
  %v569 = vsel %vm151, %v521, %v551
  %v571 = vsel %vm292, %v567, %v563
  %v573 = vsel %vm292, %v569, %v565
  %v574 = vld [vmem:[%s9] sm:$0xf]
  %v575 = vld [vmem:[%s9 + $0x4] sm:$0xf]
  %v576 = vld [vmem:[%s9 + $0x8] sm:$0xf]
  %v577 = vld [vmem:[%s9 + $0xc] sm:$0xf]
  %v578 = vld [vmem:[%s9 + $0x10] sm:$0xf]
  %v579 = vld [vmem:[%s9 + $0x14] sm:$0xf]
  %v580 = vld [vmem:[%s9 + $0x18] sm:$0xf]
  %v581 = vld [vmem:[%s9 + $0x1c] sm:$0xf]
  %v582 = vld [vmem:[%s9 + $0x20] sm:$0xf]
  %v583 = vld [vmem:[%s9 + $0x24] sm:$0xf]
  %v584 = vld [vmem:[%s9 + $0x28] sm:$0xf]
  %v585 = vld [vmem:[%s9 + $0x2c] sm:$0xf]
  %v586 = vld [vmem:[%s10] sm:$0x1]
  %v588 = vlaneseq
  %v589 = vshrl.u32 %v588, 7
  %v590 = vsub.s32 0, %v589
  %v591 = vrot.slane %v586, %v590
  %v605 = vunpack.c.l.b16 %v574
  %v606 = vunpack.c.l.b16 %v575
  %v607 = vunpack.c.l.b16 %v576
  %v608 = vunpack.c.l.b16 %v577
  %v609 = vunpack.c.l.b16 %v578
  %v610 = vunpack.c.l.b16 %v579
  %v611 = vunpack.c.l.b16 %v580
  %v612 = vunpack.c.l.b16 %v581
  %v613 = vunpack.c.l.b16 %v582
  %v614 = vunpack.c.l.b16 %v583
  %v615 = vunpack.c.l.b16 %v584
  %v616 = vunpack.c.l.b16 %v585
  %v617 = vpack.c.b16 %v606, %v605
  %v618 = vpack.c.b16 %v608, %v607
  %v619 = vpack.c.b16 %v610, %v609
  %v620 = vpack.c.b16 %v612, %v611
  %v621 = vpack.c.b16 %v614, %v613
  %v622 = vpack.c.b16 %v616, %v615
  %v629 = vsel %vm352, %v571, 0
  %v631 = vsel %vm352, %v573, 0
  %633 = vmatprep.subr.bf16.mxu0 0
  %634 = vmatpush1.bf16.msra.mxu0 0
  %635 = vmatprep.subr.bf16.mxu0 0
  %636 = vmatpush1.bf16.msra.mxu0 0
  %637 = vmatprep.subr.bf16.mxu0 0
  %638 = vmatpush1.bf16.msra.mxu0 %v622
  %639 = vmatprep.subr.bf16.mxu0 0
  %640 = vmatpush1.bf16.msra.mxu0 %v621
  %641 = vmatprep.subr.bf16.mxu0 0
  %642 = vmatpush1.bf16.msra.mxu0 %v620
  %643 = vmatprep.subr.bf16.mxu0 0
  %644 = vmatpush1.bf16.msra.mxu0 %v619
  %645 = vmatprep.subr.bf16.mxu0 0
  %646 = vmatpush1.bf16.msra.mxu0 %v618
  %647 = vmatprep.subr.bf16.mxu0 0
  %648 = vmatpush1.bf16.msra.mxu0 %v617
  %649 = vmatprep.subr.bf16.mxu0 0
  %650 = vmatpush2.bf16.msra.mxu0 0
  %651 = vmatprep.subr.bf16.mxu0 0
  %652 = vmatpush2.bf16.msra.mxu0 0
  %653 = vmatprep.subr.bf16.mxu0 0
  %654 = vmatpush2.bf16.msra.mxu0 0
  %655 = vmatprep.subr.bf16.mxu0 0
  %656 = vmatpush2.bf16.msra.mxu0 0
  %657 = vmatprep.subr.bf16.mxu0 0
  %658 = vmatpush2.bf16.msra.mxu0 0
  %659 = vmatprep.subr.bf16.mxu0 0
  %660 = vmatpush2.bf16.msra.mxu0 0
  %661 = vmatprep.subr.bf16.mxu0 0
  %662 = vmatpush2.bf16.msra.mxu0 0
  %663 = vmatprep.subr.bf16.mxu0 0
  %664 = vmatpush2.bf16.msra.mxu0 0
  %665 = vmatprep.mubr.bf16.mxu0 0
  %666 = vmatmul.mubr.bf16.gmra.mxu0 %v629
  %v667 = vpop.f32.mrf.mxu0
  %v668 = vadd.f32 %v591, %v667
  %v669 = vpop.f32.mrf.mxu0
  %v670 = vpop.f32.mrf.mxu0
  %v671 = vadd.f32 %v591, %v670
  %v672 = vpop.f32.mrf.mxu0
  %673 = vmatprep.mubr.bf16.mxu0 0
  %674 = vmatmul.mubr.bf16.gmra.mxu0 %v631
  %v675 = vpop.f32.mrf.mxu0
  %v676 = vadd.f32 %v591, %v675
  %v677 = vpop.f32.mrf.mxu0
  %v678 = vpop.f32.mrf.mxu0
  %v679 = vadd.f32 %v591, %v678
  %v680 = vpop.f32.mrf.mxu0
  %681 = vdwg.mxu0
  %v682 = vmax.f32 %v668, 0.0
  %v683 = vmax.f32 %v671, 0.0
  %v684 = vmax.f32 %v676, 0.0
  %v685 = vmax.f32 %v679, 0.0
  %v686 = vpack.c.bf16 %v683, %v682
  %v687 = vpack.c.bf16 %v685, %v684
  %v688 = vld [vmem:[%s11] sm:$0xf]
  %v689 = vld [vmem:[%s11 + $0x4] sm:$0xf]
  %v690 = vld [vmem:[%s11 + $0x8] sm:$0xf]
  %v691 = vld [vmem:[%s11 + $0xc] sm:$0xf]
  %v692 = vld [vmem:[%s12] sm:$0x1]
  %v694 = vlaneseq
  %v695 = vshrl.u32 %v694, 7
  %v696 = vsub.s32 0, %v695
  %v697 = vrot.slane %v692, %v696
  %v703 = vunpack.c.l.b16 %v688
  %v704 = vunpack.c.l.b16 %v689
  %v705 = vunpack.c.l.b16 %v690
  %v706 = vunpack.c.l.b16 %v691
  %v707 = vpack.c.b16 %v704, %v703
  %v708 = vpack.c.b16 %v706, %v705
  %v712 = vsel %vm151, %v686, 0
  %v715 = vsel %vm151, %v687, 0
  %717 = vmatprep.subr.bf16.mxu0 0
  %718 = vmatpush1.bf16.msra.mxu0 0
  %719 = vmatprep.subr.bf16.mxu0 0
  %720 = vmatpush1.bf16.msra.mxu0 0
  %721 = vmatprep.subr.bf16.mxu0 0
  %722 = vmatpush1.bf16.msra.mxu0 0
  %723 = vmatprep.subr.bf16.mxu0 0
  %724 = vmatpush1.bf16.msra.mxu0 0
  %725 = vmatprep.subr.bf16.mxu0 0
  %726 = vmatpush1.bf16.msra.mxu0 0
  %727 = vmatprep.subr.bf16.mxu0 0
  %728 = vmatpush1.bf16.msra.mxu0 0
  %729 = vmatprep.subr.bf16.mxu0 0
  %730 = vmatpush1.bf16.msra.mxu0 %v708
  %731 = vmatprep.subr.bf16.mxu0 0
  %732 = vmatpush1.bf16.msra.mxu0 %v707
  %733 = vmatprep.subr.bf16.mxu0 0
  %734 = vmatpush2.bf16.msra.mxu0 0
  %735 = vmatprep.subr.bf16.mxu0 0
  %736 = vmatpush2.bf16.msra.mxu0 0
  %737 = vmatprep.subr.bf16.mxu0 0
  %738 = vmatpush2.bf16.msra.mxu0 0
  %739 = vmatprep.subr.bf16.mxu0 0
  %740 = vmatpush2.bf16.msra.mxu0 0
  %741 = vmatprep.subr.bf16.mxu0 0
  %742 = vmatpush2.bf16.msra.mxu0 0
  %743 = vmatprep.subr.bf16.mxu0 0
  %744 = vmatpush2.bf16.msra.mxu0 0
  %745 = vmatprep.subr.bf16.mxu0 0
  %746 = vmatpush2.bf16.msra.mxu0 0
  %747 = vmatprep.subr.bf16.mxu0 0
  %748 = vmatpush2.bf16.msra.mxu0 0
  %749 = vmatprep.mubr.bf16.mxu0 0
  %750 = vmatmul.mubr.bf16.gmra.mxu0 %v712
  %v751 = vpop.f32.mrf.mxu0
  %v752 = vadd.f32 %v697, %v751
  %v753 = vpop.f32.mrf.mxu0
  %v754 = vpop.f32.mrf.mxu0
  %v755 = vadd.f32 %v697, %v754
  %v756 = vpop.f32.mrf.mxu0
  %757 = vmatprep.mubr.bf16.mxu0 0
  %758 = vmatmul.mubr.bf16.gmra.mxu0 %v715
  %v759 = vpop.f32.mrf.mxu0
  %v760 = vadd.f32 %v697, %v759
  %v761 = vpop.f32.mrf.mxu0
  %v762 = vpop.f32.mrf.mxu0
  %v763 = vadd.f32 %v697, %v762
  %v764 = vpop.f32.mrf.mxu0
  %765 = vdwg.mxu0
  %vm766 = vcmask 31744
  %767 = vst.msk [vmem:[%s13] sm:$0xff] %vm766, %v752
  %768 = vst.msk [vmem:[%s13 + $0x8] sm:$0xff] %vm766, %v755
  %769 = vst.msk [vmem:[%s13 + $0x10] sm:$0xff] %vm766, %v760
  %770 = vst.msk [vmem:[%s13 + $0x18] sm:$0xff] %vm766, %v763
  // Predicated region
  $region54: #{mlp_conv_forward.1} parent=0 // pred_check
    _
  $region55: #{mlp_conv_forward.1} parent=0 // pred_check_branch
    %772 = sbr.rel (0) target = $region57
  $region56: #{mlp_conv_forward.1} parent=0 // pred_region
    _
  $region57: #{mlp_conv_forward.1} parent=0 // pred_fallthru
    _
  // Predicated region
  $region58: #{mlp_conv_forward.1} parent=0 // pred_check
    _
  $region59: #{mlp_conv_forward.1} parent=0 // pred_check_branch
    %774 = sbr.rel (0) target = $region61
  $region60: #{mlp_conv_forward.1} parent=0 // pred_region
    _
  $region61: #{mlp_conv_forward.1} parent=0 // pred_fallthru
    _

</llo_original>
